<compile_context>
chip_gen: v7x
topology: tpu7x:2x2x1
jax: 0.10.0
libtpu: 0.0.40
codegen_flags: <defaults>
</compile_context>

<pallas_src>
import functools

import jax
import jax.numpy as jnp
from jax.experimental import pallas as pl
from jax.experimental.pallas import tpu as pltpu


def _round_up(x, m):
    return (x + m - 1) // m * m


def _layernorm_rows(x, gamma, beta, *, eps, n_valid):
    """Row LayerNorm on an f32 tile whose padded lanes (>= n_valid) are zero."""
    inv_n = jnp.float32(1.0 / n_valid)
    sum_x = jnp.sum(x, axis=-1, keepdims=True)
    sum_x2 = jnp.sum(x * x, axis=-1, keepdims=True)
    mean = sum_x * inv_n
    var = jnp.maximum(sum_x2 * inv_n - mean * mean, 0.0)
    inv = jax.lax.rsqrt(var + eps)
    return (x - mean) * inv * gamma + beta


def _bert_output_kernel(hs_ref, w_ref, b_ref, res_ref, gamma_ref, beta_ref,
                        o_ref, *, eps, n_valid):
    """Single-K-block variant: matmul + bias + residual + LayerNorm fused."""
    x = jnp.dot(hs_ref[...], w_ref[...], preferred_element_type=jnp.float32)
    x = x + b_ref[...].astype(jnp.float32) + res_ref[...].astype(jnp.float32)
    y = _layernorm_rows(x, gamma_ref[...].astype(jnp.float32),
                        beta_ref[...].astype(jnp.float32),
                        eps=eps, n_valid=n_valid)
    o_ref[...] = y.astype(o_ref.dtype)


def _bert_output_kernel_ktiled(hs_ref, w_ref, b_ref, res_ref, gamma_ref,
                               beta_ref, o_ref, acc_ref, *, eps, n_valid):
    """K-tiled variant: accumulate partial matmuls into an f32 VMEM scratch."""
    k = pl.program_id(1)

    @pl.when(k == 0)
    def _():
        acc_ref[...] = jnp.zeros_like(acc_ref)

    acc_ref[...] += jnp.dot(hs_ref[...], w_ref[...],
                            preferred_element_type=jnp.float32)

    @pl.when(k == pl.num_programs(1) - 1)
    def _():
        x = (acc_ref[...] + b_ref[...].astype(jnp.float32)
             + res_ref[...].astype(jnp.float32))
        y = _layernorm_rows(x, gamma_ref[...].astype(jnp.float32),
                            beta_ref[...].astype(jnp.float32),
                            eps=eps, n_valid=n_valid)
        o_ref[...] = y.astype(o_ref.dtype)


def bert_output(hidden_states, input_tensor, w, b, gamma, beta,
                *, eps=1e-12, tm=512, tk=None, mxu_dtype=None, out_dtype=None):
    """Fused BertOutput forward.

    hidden_states: (B, S, K)  -- intermediate activations (K = intermediate_size)
    input_tensor:  (B, S, N)  -- residual input (N = hidden_size)
    w: (K, N), b/gamma/beta: (N,)
    mxu_dtype: optional dtype (e.g. jnp.bfloat16) for the matmul operands.
    tk: optional forced K tile (multiple of 128); default: auto (single K block
        unless the weight/activation footprint would overflow VMEM).
    """
    B, S, K = hidden_states.shape
    N = input_tensor.shape[-1]
    M = B * S
    out_dtype = out_dtype or input_tensor.dtype

    # Optionally feed the MXU bf16 operands (accumulation stays f32).
    if mxu_dtype is not None:
        hs = hidden_states.astype(mxu_dtype)
        wm = w.astype(mxu_dtype)
    else:
        hs, wm = hidden_states, w

    # Lane/sublane-friendly padded sizes.
    Kp = _round_up(K, 128)
    Np = _round_up(N, 128)

    in_bytes = jnp.dtype(hs.dtype).itemsize
    w_bytes = jnp.dtype(wm.dtype).itemsize
    res_bytes = jnp.dtype(input_tensor.dtype).itemsize
    out_bytes = jnp.dtype(out_dtype).itemsize

    VMEM_BUDGET = 48 << 20

    # Row tile: as large as possible (target `tm`), multiple of 8, no larger
    # than the (8-rounded) token count.
    tm = min(_round_up(max(tm, 8), 8), _round_up(M, 8))

    def _est(tm_, tk_, tiled):
        acc = tm_ * Np * 4 if tiled else 0
        return (2 * tm_ * tk_ * in_bytes      # hs tiles (double-buffered)
                + 2 * tk_ * Np * w_bytes      # weight tiles
                + 2 * tm_ * Np * res_bytes    # residual tiles
                + 2 * tm_ * Np * out_bytes    # output tiles
                + acc                         # f32 accumulator scratch
                + 2 * tm_ * Np * 4            # f32 matmul / LN temporaries
                + 6 * Np * 4)                 # bias / gamma / beta

    if tk is None:
        # Prefer a single K block (no accumulator round trips).  Shrink tm
        # first; only tile K when even small tm cannot hold the weight block.
        if _est(tm, Kp, tiled=False) <= VMEM_BUDGET:
            tk = Kp
        else:
            t = tm
            while t > 64 and _est(t, Kp, tiled=False) > VMEM_BUDGET:
                t = max(64, t // 2)
            if _est(t, Kp, tiled=False) <= VMEM_BUDGET:
                tm, tk = t, Kp
            else:
                tk = min(Kp, 512)
                while (_est(tm, tk, tiled=True) > VMEM_BUDGET
                       and (tm > 8 or tk > 128)):
                    if tm > 8:
                        tm = max(8, tm // 2)
                    else:
                        tk = max(128, tk // 2)
    else:
        tk = min(_round_up(max(tk, 128), 128), Kp)

    Mp = _round_up(M, tm)
    Kp = _round_up(Kp, tk)
    nk = Kp // tk
    k_tiled = nk > 1

    # Scoped VMEM limit: enough for this kernel, capped at 64 MiB (v7x-safe).
    vmem_limit = int(min(max(_est(tm, tk, tiled=k_tiled) * 5 // 4 + (2 << 20),
                             32 << 20), 64 << 20))

    # Flatten + zero-pad to (Mp, Kp) / (Mp, Np) / (Kp, Np).  Zero padding keeps
    # the matmul and the LN statistics exact (padded lanes contribute 0).
    hs2d = hs.reshape(M, K)
    res2d = input_tensor.reshape(M, N)
    if (Mp, Kp) != (M, K):
        hs2d = jnp.pad(hs2d, ((0, Mp - M), (0, Kp - K)))
    if (Mp, Np) != (M, N):
        res2d = jnp.pad(res2d, ((0, Mp - M), (0, Np - N)))
    if (Kp, Np) != (K, N):
        wm = jnp.pad(wm, ((0, Kp - K), (0, Np - N)))
    b2d = jnp.pad(b.reshape(1, N), ((0, 0), (0, Np - N)))
    gamma2d = jnp.pad(gamma.reshape(1, N), ((0, 0), (0, Np - N)))
    beta2d = jnp.pad(beta.reshape(1, N), ((0, 0), (0, Np - N)))

    if not k_tiled:
        kernel = functools.partial(_bert_output_kernel, eps=eps, n_valid=N)
        grid = (Mp // tm,)
        in_specs = [
            pl.BlockSpec((tm, Kp), lambda i: (i, 0)),   # hidden_states tile
            pl.BlockSpec((Kp, Np), lambda i: (0, 0)),   # dense weight (full)
            pl.BlockSpec((1, Np), lambda i: (0, 0)),    # dense bias
            pl.BlockSpec((tm, Np), lambda i: (i, 0)),   # residual tile
            pl.BlockSpec((1, Np), lambda i: (0, 0)),    # LN gamma
            pl.BlockSpec((1, Np), lambda i: (0, 0)),    # LN beta
        ]
        out_spec = pl.BlockSpec((tm, Np), lambda i: (i, 0))
        scratch = []
        dim_sem = ("parallel",)
    else:
        kernel = functools.partial(_bert_output_kernel_ktiled,
                                   eps=eps, n_valid=N)
        grid = (Mp // tm, nk)
        in_specs = [
            pl.BlockSpec((tm, tk), lambda i, k_: (i, k_)),  # hidden_states tile
            pl.BlockSpec((tk, Np), lambda i, k_: (k_, 0)),  # dense weight tile
            pl.BlockSpec((1, Np), lambda i, k_: (0, 0)),    # dense bias
            pl.BlockSpec((tm, Np), lambda i, k_: (i, 0)),   # residual tile
            pl.BlockSpec((1, Np), lambda i, k_: (0, 0)),    # LN gamma
            pl.BlockSpec((1, Np), lambda i, k_: (0, 0)),    # LN beta
        ]
        out_spec = pl.BlockSpec((tm, Np), lambda i, k_: (i, 0))
        scratch = [pltpu.VMEM((tm, Np), jnp.float32)]
        dim_sem = ("parallel", "arbitrary")

    out2d = pl.pallas_call(
        kernel,
        out_shape=jax.ShapeDtypeStruct((Mp, Np), out_dtype),
        grid_spec=pltpu.PrefetchScalarGridSpec(
            num_scalar_prefetch=0,
            grid=grid,
            in_specs=in_specs,
            out_specs=out_spec,
            scratch_shapes=scratch,
        ),
        compiler_params=pltpu.CompilerParams(
            dimension_semantics=dim_sem,
            vmem_limit_bytes=vmem_limit),
    )(hs2d, wm, b2d, res2d, gamma2d, beta2d)

    return out2d[:M, :N].reshape(B, S, N)


def _reference(hidden_states, input_tensor, w, b, gamma, beta, eps):
    B, S, K = hidden_states.shape
    N = input_tensor.shape[-1]
    ref = hidden_states.reshape(-1, K).astype(jnp.float32) @ w.astype(jnp.float32) + b
    ref = ref + input_tensor.reshape(-1, N)
    mu = ref.mean(axis=-1, keepdims=True)
    var = ((ref - mu) ** 2).mean(axis=-1, keepdims=True)
    ref = (ref - mu) * jax.lax.rsqrt(var + eps) * gamma + beta
    return ref.reshape(B, S, N)


def _make_inputs(key, batch, seq, intermediate_size, hidden_size):
    k_hs, k_res, k_w, k_b, k_g, k_be = jax.random.split(key, 6)
    hidden_states = jax.random.normal(
        k_hs, (batch, seq, intermediate_size), dtype=jnp.float32)
    input_tensor = jax.random.normal(
        k_res, (batch, seq, hidden_size), dtype=jnp.float32)
    w = jax.random.normal(k_w, (intermediate_size, hidden_size),
                          dtype=jnp.float32) * 0.02
    b = jax.random.normal(k_b, (hidden_size,), dtype=jnp.float32) * 0.02
    gamma = jnp.ones((hidden_size,), dtype=jnp.float32) \
        + 0.01 * jax.random.normal(k_g, (hidden_size,), dtype=jnp.float32)
    beta = 0.01 * jax.random.normal(k_be, (hidden_size,), dtype=jnp.float32)
    return hidden_states, input_tensor, w, b, gamma, beta


if __name__ == "__main__":
    eps = 1e-12
    key = jax.random.PRNGKey(0)
    k0, k1 = jax.random.split(key, 2)

    # --- Small BERT-like config: intermediate_size=128, hidden_size=32. ---
    hs, res, w, b, gamma, beta = _make_inputs(k0, 2, 8, 128, 32)

    # f32 path (single-K kernel): tight check against the pure-JAX reference.
    out = bert_output(hs, res, w, b, gamma, beta, eps=eps)
    out = jax.block_until_ready(out)
    ref = _reference(hs, res, w, b, gamma, beta, eps)
    assert jnp.allclose(out, ref, atol=1e-5, rtol=1e-5), "f32 mismatch vs reference"

    # bf16 MXU-operand path (perf config): check vs bf16-cast reference.
    out_bf = bert_output(hs, res, w, b, gamma, beta, eps=eps,
                         mxu_dtype=jnp.bfloat16)
    out_bf = jax.block_until_ready(out_bf)
    hs_b = hs.astype(jnp.bfloat16).astype(jnp.float32)
    w_b = w.astype(jnp.bfloat16).astype(jnp.float32)
    ref_bf = _reference(hs_b, res, w_b, b, gamma, beta, eps)
    assert jnp.allclose(out_bf, ref_bf, atol=5e-3, rtol=5e-3), \
        "bf16 mismatch vs reference"

    # --- K-tiled accumulator path (forced tk=128, K=256 -> 2 K blocks). ---
    hs2, res2, w2, b2, gamma2, beta2 = _make_inputs(k1, 2, 8, 256, 64)
    out_k = bert_output(hs2, res2, w2, b2, gamma2, beta2, eps=eps, tk=128)
    out_k = jax.block_until_ready(out_k)
    ref_k = _reference(hs2, res2, w2, b2, gamma2, beta2, eps)
    assert jnp.allclose(out_k, ref_k, atol=1e-5, rtol=1e-5), \
        "K-tiled mismatch vs reference"

    print("KERNEL_OK")
</pallas_src>

<mosaic_0001>
module attributes {stable_mosaic.version = 11 : i64} {
  func.func @_bert_output_kernel(%arg0: i32, %arg1: memref<16x128xf32, #tpu.memory_space<vmem>>, %arg2: memref<128x128xf32, #tpu.memory_space<vmem>>, %arg3: memref<1x128xf32, #tpu.memory_space<vmem>>, %arg4: memref<16x128xf32, #tpu.memory_space<vmem>>, %arg5: memref<1x128xf32, #tpu.memory_space<vmem>>, %arg6: memref<1x128xf32, #tpu.memory_space<vmem>>, %arg7: memref<16x128xf32, #tpu.memory_space<vmem>>) attributes {dimension_semantics = [#tpu.dimension_semantics<parallel>], iteration_bounds = array<i64: 1>, scalar_prefetch = 0 : i64, scratch_operands = 0 : i64, tpu.core_type = #tpu.core_type<tc>, window_params = [{transform_indices = @transform_0, window_bounds = array<i64: 16, 128>}, {pipeline_mode = #tpu.pipeline_mode<synchronous>, transform_indices = @transform_1, window_bounds = array<i64: 128, 128>}, {pipeline_mode = #tpu.pipeline_mode<synchronous>, transform_indices = @transform_2, window_bounds = array<i64: 1, 128>}, {transform_indices = @transform_3, window_bounds = array<i64: 16, 128>}, {pipeline_mode = #tpu.pipeline_mode<synchronous>, transform_indices = @transform_4, window_bounds = array<i64: 1, 128>}, {pipeline_mode = #tpu.pipeline_mode<synchronous>, transform_indices = @transform_5, window_bounds = array<i64: 1, 128>}, {transform_indices = @transform_6, window_bounds = array<i64: 16, 128>}]} {
    %c0 = arith.constant 0 : index
    %c0_0 = arith.constant 0 : index
    %0 = vector.load %arg1[%c0, %c0_0] : memref<16x128xf32, #tpu.memory_space<vmem>>, vector<16x128xf32>
    %c0_1 = arith.constant 0 : index
    %c0_2 = arith.constant 0 : index
    %1 = vector.load %arg2[%c0_1, %c0_2] : memref<128x128xf32, #tpu.memory_space<vmem>>, vector<128x128xf32>
    %cst = arith.constant dense<0.000000e+00> : vector<16x128xf32>
    %2 = tpu.matmul %0, %1, %cst {dimension_numbers = #tpu.dot_dimension_numbers<[1], [0], [0], [1], [0, 0, 1, 1], [], []>} : vector<16x128xf32>, vector<128x128xf32>, vector<16x128xf32> -> vector<16x128xf32>
    %c0_3 = arith.constant 0 : index
    %c0_4 = arith.constant 0 : index
    %3 = vector.load %arg3[%c0_3, %c0_4] : memref<1x128xf32, #tpu.memory_space<vmem>>, vector<1x128xf32>
    %4 = vector.broadcast %3 : vector<1x128xf32> to vector<16x128xf32>
    %5 = arith.addf %2, %4 : vector<16x128xf32>
    %c0_5 = arith.constant 0 : index
    %c0_6 = arith.constant 0 : index
    %6 = vector.load %arg4[%c0_5, %c0_6] : memref<16x128xf32, #tpu.memory_space<vmem>>, vector<16x128xf32>
    %7 = arith.addf %5, %6 : vector<16x128xf32>
    %c0_7 = arith.constant 0 : index
    %c0_8 = arith.constant 0 : index
    %8 = vector.load %arg5[%c0_7, %c0_8] : memref<1x128xf32, #tpu.memory_space<vmem>>, vector<1x128xf32>
    %c0_9 = arith.constant 0 : index
    %c0_10 = arith.constant 0 : index
    %9 = vector.load %arg6[%c0_9, %c0_10] : memref<1x128xf32, #tpu.memory_space<vmem>>, vector<1x128xf32>
    %cst_11 = arith.constant dense<0.000000e+00> : vector<16xf32>
    %10 = vector.multi_reduction <add>, %7, %cst_11 [1] : vector<16x128xf32> to vector<16xf32>
    %11 = vector.shape_cast %10 : vector<16xf32> to vector<16x1xf32>
    %12 = arith.mulf %7, %7 : vector<16x128xf32>
    %cst_12 = arith.constant dense<0.000000e+00> : vector<16xf32>
    %13 = vector.multi_reduction <add>, %12, %cst_12 [1] : vector<16x128xf32> to vector<16xf32>
    %14 = vector.shape_cast %13 : vector<16xf32> to vector<16x1xf32>
    %cst_13 = arith.constant 3.125000e-02 : f32
    %15 = vector.broadcast %cst_13 : f32 to vector<16x1xf32>
    %16 = arith.mulf %11, %15 : vector<16x1xf32>
    %cst_14 = arith.constant 3.125000e-02 : f32
    %17 = vector.broadcast %cst_14 : f32 to vector<16x1xf32>
    %18 = arith.mulf %14, %17 : vector<16x1xf32>
    %19 = arith.mulf %16, %16 : vector<16x1xf32>
    %20 = arith.subf %18, %19 : vector<16x1xf32>
    %cst_15 = arith.constant 0.000000e+00 : f32
    %21 = vector.broadcast %cst_15 : f32 to vector<16x1xf32>
    %22 = arith.maximumf %20, %21 : vector<16x1xf32>
    %cst_16 = arith.constant 9.99999996E-13 : f32
    %23 = vector.broadcast %cst_16 : f32 to vector<16x1xf32>
    %24 = arith.addf %22, %23 : vector<16x1xf32>
    %25 = math.rsqrt %24 : vector<16x1xf32>
    %26 = vector.broadcast %16 : vector<16x1xf32> to vector<16x128xf32>
    %27 = arith.subf %7, %26 : vector<16x128xf32>
    %28 = vector.broadcast %25 : vector<16x1xf32> to vector<16x128xf32>
    %29 = arith.mulf %27, %28 : vector<16x128xf32>
    %30 = vector.broadcast %8 : vector<1x128xf32> to vector<16x128xf32>
    %31 = arith.mulf %29, %30 : vector<16x128xf32>
    %32 = vector.broadcast %9 : vector<1x128xf32> to vector<16x128xf32>
    %33 = arith.addf %31, %32 : vector<16x128xf32>
    %c0_17 = arith.constant 0 : index
    %c0_18 = arith.constant 0 : index
    %34 = vector.load %arg7[%c0_17, %c0_18] : memref<16x128xf32, #tpu.memory_space<vmem>>, vector<16x128xf32>
    tpu.vector_store %arg7[%c0_17, %c0_18], %33 {strides = array<i32>} : memref<16x128xf32, #tpu.memory_space<vmem>>, vector<16x128xf32>,
    return
  }
  func.func @transform_0(%arg0: i32) -> (i32, i32) {
    %c0_i32 = arith.constant 0 : i32
    %c0_i32_0 = arith.constant 0 : i32
    return %arg0, %c0_i32 : i32, i32
  }
  func.func @transform_1(%arg0: i32) -> (i32, i32) {
    %c0_i32 = arith.constant 0 : i32
    %c0_i32_0 = arith.constant 0 : i32
    %c0_i32_1 = arith.constant 0 : i32
    return %c0_i32, %c0_i32_0 : i32, i32
  }
  func.func @transform_2(%arg0: i32) -> (i32, i32) {
    %c0_i32 = arith.constant 0 : i32
    %c0_i32_0 = arith.constant 0 : i32
    %c0_i32_1 = arith.constant 0 : i32
    return %c0_i32, %c0_i32_0 : i32, i32
  }
  func.func @transform_3(%arg0: i32) -> (i32, i32) {
    %c0_i32 = arith.constant 0 : i32
    %c0_i32_0 = arith.constant 0 : i32
    return %arg0, %c0_i32 : i32, i32
  }
  func.func @transform_4(%arg0: i32) -> (i32, i32) {
    %c0_i32 = arith.constant 0 : i32
    %c0_i32_0 = arith.constant 0 : i32
    %c0_i32_1 = arith.constant 0 : i32
    return %c0_i32, %c0_i32_0 : i32, i32
  }
  func.func @transform_5(%arg0: i32) -> (i32, i32) {
    %c0_i32 = arith.constant 0 : i32
    %c0_i32_0 = arith.constant 0 : i32
    %c0_i32_1 = arith.constant 0 : i32
    return %c0_i32, %c0_i32_0 : i32, i32
  }
  func.func @transform_6(%arg0: i32) -> (i32, i32) {
    %c0_i32 = arith.constant 0 : i32
    %c0_i32_0 = arith.constant 0 : i32
    return %arg0, %c0_i32 : i32, i32
  }
}

</mosaic_0001>

<llo_original>
// kernel: tpu_custom_call.1
$region0: #{tpu_custom_call.1}
  #allocation0 [shape = 'u32[]', space=smem, size = 0x4, offset = 0x4, fixed_abs, tag = 'smem constant byte address 0x4 - core index']
  #allocation1 [shape = 'u32[144,128]{1,0:T(1,128)}', space=vmem, size = 0x12000, scoped, tag = 'internal scratch']
  %s0 = inlined_call_operand.hbm [shape: f32[16,128], index: 0, kind: input, shape index: {}]
  %s1 = inlined_call_operand.hbm [shape: f32[128,128], index: 1, kind: input, shape index: {}]
  %s2 = inlined_call_operand.vmem [shape: f32[1,128], index: 2, kind: input, shape index: {}]
  %s3 = inlined_call_operand.hbm [shape: f32[16,128], index: 3, kind: input, shape index: {}]
  %s4 = inlined_call_operand.vmem [shape: f32[1,128], index: 4, kind: input, shape index: {}]
  %s5 = inlined_call_operand.vmem [shape: f32[1,128], index: 5, kind: input, shape index: {}]
  %s6 = inlined_call_operand.hbm [shape: f32[16,128], index: 6, kind: output, shape index: {}]
  %s7 = sld [smem:[#allocation0]]
  $region46: #{tpu_custom_call.1} parent=0
    _
  %s9 = ssub.s32 1, %s7
  %s10 = scalar_select 0, %s9, %s7
  $region1: #{tpu_custom_call.1} parent=0
    #allocation2 [shape = 'u8[8192]{0}', space=vmem, size = 0x2000, scoped, tag = 'input window, operand 0, single buffered']
    #allocation3 [shape = 's32[1]{0}', space=sflag, size = 0x4, scoped, tag = 'scoped memory for tpu_custom_call.1']
    #allocation4 [shape = 's32[1]{0}', space=sflag, size = 0x4, scoped, tag = 'scoped memory for tpu_custom_call.1']
    #allocation5 [shape = 'u8[65536]{0}', space=vmem, size = 0x10000, scoped, tag = 'input window, operand 1, single buffered']
    #allocation6 [shape = 's32[1]{0}', space=sflag, size = 0x4, scoped, tag = 'scoped memory for tpu_custom_call.1']
    #allocation7 [shape = 'u8[8192]{0}', space=vmem, size = 0x2000, scoped, tag = 'input window, operand 3, single buffered']
    #allocation8 [shape = 'u8[8192]{0}', space=vmem, size = 0x2000, scoped, tag = 'output window, operand 0, single buffered']
    %11 = vsyncpa [#allocation3], 0
    %12 = vsyncpa [#allocation6], 0
    %13 = vsyncpa [#allocation4], 0
    // Predicated region
    $region2: #{tpu_custom_call.1} parent=1 // pred_check
      _
    $region3: #{tpu_custom_call.1} parent=1 // pred_check_branch
      %15 = sbr.rel (0) target = $region5
    $region4: #{tpu_custom_call.1} parent=1 // pred_region
      %s17 = ssub.s32 256, 256
      %18 = vsyncadd [#allocation3], %s17
      %s19 = sshll.u32 [#allocation2], 4
      %s20 = int_to_ptr.vmem [resolvable:$true] %s19
      %25 = dma.hbm_to_vmem [thread:$0]  %s0, 256, %s20, [#allocation3], 128, 128, 8
    $region5: #{tpu_custom_call.1} parent=1 // pred_fallthru
      _
    // Predicated region
    $region6: #{tpu_custom_call.1} parent=1 // pred_check
      _
    $region7: #{tpu_custom_call.1} parent=1 // pred_check_branch
      %27 = sbr.rel (0) target = $region9
    $region8: #{tpu_custom_call.1} parent=1 // pred_region
      %s29 = ssub.s32 2048, 2048
      %30 = vsyncadd [#allocation6], %s29
      %s31 = sshll.u32 [#allocation5], 4
      %s32 = int_to_ptr.vmem [resolvable:$true] %s31
      %37 = dma.hbm_to_vmem [thread:$0]  %s1, 2048, %s32, [#allocation6], 128, 128, 8
    $region9: #{tpu_custom_call.1} parent=1 // pred_fallthru
      _
    // Predicated region
    $region10: #{tpu_custom_call.1} parent=1 // pred_check
      _
    $region11: #{tpu_custom_call.1} parent=1 // pred_check_branch
      %39 = sbr.rel (0) target = $region13
    $region12: #{tpu_custom_call.1} parent=1 // pred_region
      _
    $region13: #{tpu_custom_call.1} parent=1 // pred_fallthru
      _
    // Predicated region
    $region14: #{tpu_custom_call.1} parent=1 // pred_check
      _
    $region15: #{tpu_custom_call.1} parent=1 // pred_check_branch
      %41 = sbr.rel (0) target = $region17
    $region16: #{tpu_custom_call.1} parent=1 // pred_region
      %s43 = ssub.s32 256, 256
      %44 = vsyncadd [#allocation6], %s43
      %s45 = sshll.u32 [#allocation7], 4
      %s46 = int_to_ptr.vmem [resolvable:$true] %s45
      %51 = dma.hbm_to_vmem [thread:$0]  %s3, 256, %s46, [#allocation6], 128, 128, 8
    $region17: #{tpu_custom_call.1} parent=1 // pred_fallthru
      _
    // Predicated region
    $region18: #{tpu_custom_call.1} parent=1 // pred_check
      _
    $region19: #{tpu_custom_call.1} parent=1 // pred_check_branch
      %53 = sbr.rel (0) target = $region21
    $region20: #{tpu_custom_call.1} parent=1 // pred_region
      _
    $region21: #{tpu_custom_call.1} parent=1 // pred_fallthru
      _
    // Predicated region
    $region22: #{tpu_custom_call.1} parent=1 // pred_check
      _
    $region23: #{tpu_custom_call.1} parent=1 // pred_check_branch
      %55 = sbr.rel (0) target = $region25
    $region24: #{tpu_custom_call.1} parent=1 // pred_region
      _
    $region25: #{tpu_custom_call.1} parent=1 // pred_fallthru
      _
    // Predicated region
    $region26: #{tpu_custom_call.1} parent=1 // pred_check
      _
    $region27: #{tpu_custom_call.1} parent=1 // pred_check_branch
      %57 = sbr.rel (0) target = $region29
    $region28: #{tpu_custom_call.1} parent=1 // pred_region
      %58 = dma.done [#allocation3], 256
    $region29: #{tpu_custom_call.1} parent=1 // pred_fallthru
      _
    // Predicated region
    $region30: #{tpu_custom_call.1} parent=1 // pred_check
      _
    $region31: #{tpu_custom_call.1} parent=1 // pred_check_branch
      %60 = sbr.rel (0) target = $region33
    $region32: #{tpu_custom_call.1} parent=1 // pred_region
      %61 = dma.done [#allocation6], 2048
    $region33: #{tpu_custom_call.1} parent=1 // pred_fallthru
      _
    // Predicated region
    $region34: #{tpu_custom_call.1} parent=1 // pred_check
      _
    $region35: #{tpu_custom_call.1} parent=1 // pred_check_branch
      %63 = sbr.rel (0) target = $region37
    $region36: #{tpu_custom_call.1} parent=1 // pred_region
      %64 = dma.done [#allocation6], 256
    $region37: #{tpu_custom_call.1} parent=1 // pred_fallthru
      _
    %v65 = vld [vmem:[#allocation2] sm:$0xff]
    %v66 = vld [vmem:[#allocation2 + $0x8] sm:$0xff]
    %v67 = vld [vmem:[#allocation5] sm:$0xff]
    %v68 = vld [vmem:[#allocation5 + $0x8] sm:$0xff]
    %v69 = vld [vmem:[#allocation5 + $0x10] sm:$0xff]
    %v70 = vld [vmem:[#allocation5 + $0x18] sm:$0xff]
    %v71 = vld [vmem:[#allocation5 + $0x20] sm:$0xff]
    %v72 = vld [vmem:[#allocation5 + $0x28] sm:$0xff]
    %v73 = vld [vmem:[#allocation5 + $0x30] sm:$0xff]
    %v74 = vld [vmem:[#allocation5 + $0x38] sm:$0xff]
    %v75 = vld [vmem:[#allocation5 + $0x40] sm:$0xff]
    %v76 = vld [vmem:[#allocation5 + $0x48] sm:$0xff]
    %v77 = vld [vmem:[#allocation5 + $0x50] sm:$0xff]
    %v78 = vld [vmem:[#allocation5 + $0x58] sm:$0xff]
    %v79 = vld [vmem:[#allocation5 + $0x60] sm:$0xff]
    %v80 = vld [vmem:[#allocation5 + $0x68] sm:$0xff]
    %v81 = vld [vmem:[#allocation5 + $0x70] sm:$0xff]
    %v82 = vld [vmem:[#allocation5 + $0x78] sm:$0xff]
    %v83 = vld [vmem:[%s2] sm:$0x1]
    %v85 = vlaneseq
    %v86 = vshrl.u32 %v85, 7
    %v87 = vsub.s32 0, %v86
    %v88 = vrot.slane %v83, %v87
    %90 = vmatprep.subr.mxu0 0.0
    %91 = vmatpush1.msra.mxu0 %v67
    %92 = vmatprep.subr.mxu0 0.0
    %93 = vmatpush1.msra.mxu0 %v68
    %94 = vmatprep.subr.mxu0 0.0
    %95 = vmatpush1.msra.mxu0 %v69
    %96 = vmatprep.subr.mxu0 0.0
    %97 = vmatpush1.msra.mxu0 %v70
    %98 = vmatprep.subr.mxu0 0.0
    %99 = vmatpush1.msra.mxu0 %v71
    %100 = vmatprep.subr.mxu0 0.0
    %101 = vmatpush1.msra.mxu0 %v72
    %102 = vmatprep.subr.mxu0 0.0
    %103 = vmatpush1.msra.mxu0 %v73
    %104 = vmatprep.subr.mxu0 0.0
    %105 = vmatpush1.msra.mxu0 %v74
    %106 = vmatprep.subr.mxu0 0.0
    %107 = vmatpush1.msra.mxu0 %v75
    %108 = vmatprep.subr.mxu0 0.0
    %109 = vmatpush1.msra.mxu0 %v76
    %110 = vmatprep.subr.mxu0 0.0
    %111 = vmatpush1.msra.mxu0 %v77
    %112 = vmatprep.subr.mxu0 0.0
    %113 = vmatpush1.msra.mxu0 %v78
    %114 = vmatprep.subr.mxu0 0.0
    %115 = vmatpush1.msra.mxu0 %v79
    %116 = vmatprep.subr.mxu0 0.0
    %117 = vmatpush1.msra.mxu0 %v80
    %118 = vmatprep.subr.mxu0 0.0
    %119 = vmatpush1.msra.mxu0 %v81
    %120 = vmatprep.subr.mxu0 0.0
    %121 = vmatpush1.msra.mxu0 %v82
    %122 = vmatprep.subr.mxu0 0.0
    %123 = vmatpush1.msra.mxu0 0.0
    %124 = vmatprep.subr.mxu0 0.0
    %125 = vmatpush1.msra.mxu0 0.0
    %126 = vmatprep.subr.mxu0 0.0
    %127 = vmatpush1.msra.mxu0 0.0
    %128 = vmatprep.subr.mxu0 0.0
    %129 = vmatpush1.msra.mxu0 0.0
    %130 = vmatprep.subr.mxu0 0.0
    %131 = vmatpush1.msra.mxu0 0.0
    %132 = vmatprep.subr.mxu0 0.0
    %133 = vmatpush1.msra.mxu0 0.0
    %134 = vmatprep.subr.mxu0 0.0
    %135 = vmatpush1.msra.mxu0 0.0
    %136 = vmatprep.subr.mxu0 0.0
    %137 = vmatpush1.msra.mxu0 0.0
    %138 = vmatprep.subr.mxu0 0.0
    %139 = vmatpush1.msra.mxu0 0.0
    %140 = vmatprep.subr.mxu0 0.0
    %141 = vmatpush1.msra.mxu0 0.0
    %142 = vmatprep.subr.mxu0 0.0
    %143 = vmatpush1.msra.mxu0 0.0
    %144 = vmatprep.subr.mxu0 0.0
    %145 = vmatpush1.msra.mxu0 0.0
    %146 = vmatprep.subr.mxu0 0.0
    %147 = vmatpush1.msra.mxu0 0.0
    %148 = vmatprep.subr.mxu0 0.0
    %149 = vmatpush1.msra.mxu0 0.0
    %150 = vmatprep.subr.mxu0 0.0
    %151 = vmatpush1.msra.mxu0 0.0
    %152 = vmatprep.subr.mxu0 0.0
    %153 = vmatpush1.msra.mxu0 0.0
    %154 = vmatprep.mubr.f32.mxu0 0.0
    %155 = vmatmul.mubr.f32.gmra.mrb[0].mxu0 %v65
    %v156 = vpop.f32.mrb[0].mxu0
    %v157 = vadd.f32 %v88, %v156
    %v158 = vpop.f32.mrb[0].mxu0
    %159 = vmatprep.mubr.f32.mxu0 0.0
    %160 = vmatmul.mubr.f32.gmra.mrb[0].mxu0 %v66
    %v161 = vpop.f32.mrb[0].mxu0
    %v162 = vadd.f32 %v88, %v161
    %v163 = vpop.f32.mrb[0].mxu0
    %164 = vdwg.mxu0
    %v165 = vld [vmem:[#allocation7] sm:$0xff]
    %v166 = vld [vmem:[#allocation7 + $0x8] sm:$0xff]
    %v167 = vadd.f32 %v157, %v165
    %v168 = vadd.f32 %v162, %v166
    %v169 = vld [vmem:[%s4] sm:$0x1]
    %v170 = vld [vmem:[%s5] sm:$0x1]
    %171 = vadd.xlane.f32.xlu0 %v167
    %v172 = vpop.xlane.xlu0 %171
    %173 = vadd.xlane.f32.xlu0 %v168
    %v174 = vpop.xlane.xlu0 %173
    %v175 = vmul.f32 %v167, %v167
    %v176 = vmul.f32 %v168, %v168
    %177 = vadd.xlane.f32.xlu0 %v175
    %v178 = vpop.xlane.xlu0 %177
    %179 = vadd.xlane.f32.xlu0 %v176
    %v180 = vpop.xlane.xlu0 %179
    %v181 = vmul.f32 %v172, 0.03125
    %v182 = vmul.f32 %v174, 0.03125
    %v183 = vmul.f32 %v178, 0.03125
    %v184 = vmul.f32 %v180, 0.03125
    %v185 = vmul.f32 %v181, %v181
    %v186 = vmul.f32 %v182, %v182
    %v187 = vsub.f32 %v183, %v185
    %v188 = vsub.f32 %v184, %v186
    %v189 = vmax.f32 %v187, 0.0
    %v190 = vmax.f32 %v188, 0.0
    %v191 = vadd.f32 %v189, 1e-12
    %v192 = vadd.f32 %v190, 1e-12
    %v193 = vrsqrt.pop %v191
    %v194 = vrsqrt.pop %v192
    %v195 = vsub.f32 %v167, %v181
    %v196 = vsub.f32 %v168, %v182
    %v197 = vmul.f32 %v195, %v193
    %v198 = vmul.f32 %v196, %v194
    %v200 = vlaneseq
    %v201 = vshrl.u32 %v200, 7
    %v202 = vsub.s32 0, %v201
    %v203 = vrot.slane %v169, %v202
    %v205 = vmul.f32 %v197, %v203
    %v206 = vmul.f32 %v198, %v203
    %v208 = vlaneseq
    %v209 = vshrl.u32 %v208, 7
    %v210 = vsub.s32 0, %v209
    %v211 = vrot.slane %v170, %v210
    %v213 = vadd.f32 %v205, %v211
    %v214 = vadd.f32 %v206, %v211
    %215 = vst [vmem:[#allocation8] sm:$0xff] %v213
    %216 = vst [vmem:[#allocation8 + $0x8] sm:$0xff] %v214
    // Predicated region
    $region38: #{tpu_custom_call.1} parent=1 // pred_check
      _
    $region39: #{tpu_custom_call.1} parent=1 // pred_check_branch
      %218 = sbr.rel (0) target = $region41
    $region40: #{tpu_custom_call.1} parent=1 // pred_region
      %s220 = ssub.s32 256, 256
      %221 = vsyncadd [#allocation4], %s220
      %s222 = sshll.u32 [#allocation8], 4
      %s223 = int_to_ptr.vmem [resolvable:$true] %s222
      %228 = dma.vmem_to_hbm [thread:$0]  %s223, 256, %s6, [#allocation4], 128, 128, 8
    $region41: #{tpu_custom_call.1} parent=1 // pred_fallthru
      _
    // Predicated region
    $region42: #{tpu_custom_call.1} parent=1 // pred_check
      _
    $region43: #{tpu_custom_call.1} parent=1 // pred_check_branch
      %230 = sbr.rel (0) target = $region45
    $region44: #{tpu_custom_call.1} parent=1 // pred_region
      %231 = dma.done [#allocation4], 256
    $region45: #{tpu_custom_call.1} parent=1 // pred_fallthru
      _
    %232 = vsyncpa [#allocation3], 1
    %233 = vsyncpa [#allocation6], 1
    %234 = vsyncpa [#allocation4], 1

</llo_original>
